<compile_context>
chip_gen: v7x
topology: tpu7x:2x2x1
jax: 0.10.0
libtpu: 0.0.40
codegen_flags: <defaults>
</compile_context>

<pallas_src>
import jax
import jax.numpy as jnp
import numpy as np
from jax.experimental import pallas as pl
from jax.experimental.pallas import tpu as pltpu


def midas_wrapper_kernel(w_ref, b_ref, x_ref, o_ref):
    # w_ref: (1, C)        f32 SMEM  -- synthetic MiDaS 1x1-conv weights
    # b_ref: (1, 1)        f32 SMEM  -- bias
    # x_ref: (bt, C, H, W) VMEM      -- bt images, channel-major
    # o_ref: (bt, H, W)    VMEM f32  -- per-image depth (H on sublanes, W on lanes)
    C = x_ref.shape[1]

    # --- synthetic MiDaS head: 1x1 conv C -> 1 (disparity map) ---
    # Channels streamed one (bt, H, W) plane at a time; weights are scalar SMEM
    # reads.  Kept on the VPU (an M=1 matmul would waste the MXU rows).
    disp = x_ref[:, 0, :, :].astype(jnp.float32) * w_ref[0, 0]
    for c in range(1, C):                       # C is small & static -> unrolled
        disp = disp + x_ref[:, c, :, :].astype(jnp.float32) * w_ref[0, c]
    disp = disp + b_ref[0, 0]                   # (bt, H, W) f32

    # --- MidasWrapper normalization (exact torch semantics), fused ---
    #   disp  = disp - disp.min(-1)[0].min(-1)[0][:, None, None]
    #   disp  = disp / disp.max(-1)[0].max(-1)[0][:, None, None]
    #   depth = 1.0 / clip(disp, min=0.05)
    # max of the shifted map equals (d_max - d_min) exactly (monotone rounding),
    # so both XLU reductions run back-to-back on the raw disparity.
    d_min = jnp.min(disp, axis=(-2, -1), keepdims=True)   # (bt, 1, 1)
    d_max = jnp.max(disp, axis=(-2, -1), keepdims=True)   # (bt, 1, 1)
    norm = (disp - d_min) / (d_max - d_min)
    # NOTE: a constant image (d_max == d_min) yields 0/0 -> NaN, matching
    # torch's divide-by-zero behavior.
    depth = 1.0 / jnp.maximum(norm, 0.05)
    o_ref[...] = depth.astype(o_ref.dtype)


def _vmem_physical_bytes():
    try:
        return int(pltpu.get_tpu_info().vmem_capacity_bytes)
    except Exception:
        return 64 << 20          # conservative fallback (v7x-sized VMEM)


def midas_wrapper(x, w, b, *, batch_tile=None, out_dtype=jnp.float32):
    B, C, H, W = x.shape

    # Per-generation VMEM budget: ~3/4 of physical (96 MiB on v5e/v6e,
    # 48 MiB on v7x), with slack inside the limit for compiler scratch.
    phys_vmem = _vmem_physical_bytes()
    vmem_limit = (phys_vmem * 3) // 4
    usable = (vmem_limit * 7) // 8

    if batch_tile is None:
        # Footprint per image using padded (sublane, lane) tile sizes.
        Hp = ((H + 7) // 8) * 8
        Wp = ((W + 127) // 128) * 128
        in_blk = C * Hp * Wp * jnp.dtype(x.dtype).itemsize        # x block
        out_blk = Hp * Wp * jnp.dtype(out_dtype).itemsize         # depth block
        tmp_blk = 3 * Hp * Wp * 4                                 # f32 temporaries
        per_img = 2 * (in_blk + out_blk) + tmp_blk                # 2x = double buffer
        cap = max(1, usable // per_img)

        divisors = [d for d in range(1, B + 1) if B % d == 0 and d <= cap]
        # Prefer >= 2 grid steps when B >= 2 so both v7x TensorCores get work;
        # with dense (H, W) vregs this only costs the ~0.35us per-step overhead.
        multi = [d for d in divisors if B // d >= 2]
        if multi:
            batch_tile = max(multi)
        elif divisors:
            batch_tile = max(divisors)
        else:
            batch_tile = 1
    bt = batch_tile
    assert B % bt == 0, "batch_tile must divide the batch"

    return pl.pallas_call(
        midas_wrapper_kernel,
        out_shape=jax.ShapeDtypeStruct((B, H, W), out_dtype),
        grid=(B // bt,),
        in_specs=[
            pl.BlockSpec(memory_space=pltpu.MemorySpace.SMEM),      # w (1, C)
            pl.BlockSpec(memory_space=pltpu.MemorySpace.SMEM),      # b (1, 1)
            pl.BlockSpec((bt, C, H, W), lambda i: (i, 0, 0, 0)),    # x
        ],
        out_specs=pl.BlockSpec((bt, H, W), lambda i: (i, 0, 0)),
        compiler_params=pltpu.CompilerParams(
            dimension_semantics=("parallel",),
            vmem_limit_bytes=int(vmem_limit),
        ),
    )(w, b, x)


def _reference(x, w, b):
    # Pure-JAX reference mirroring the torch module (exact divides, f32).
    disp = jnp.einsum("bchw,c->bhw", x.astype(jnp.float32), w[0]) + b[0, 0]
    disp = disp - disp.min(axis=(1, 2), keepdims=True)
    disp = disp / disp.max(axis=(1, 2), keepdims=True)
    return 1.0 / jnp.maximum(disp, 0.05)


if __name__ == "__main__":
    B, C, H, W = 2, 4, 16, 16
    key = jax.random.PRNGKey(0)
    x = jax.random.normal(key, (B, C, H, W), dtype=jnp.float32)

    # Deterministic synthetic parameters (torch 1x1 conv: weight [1,C,1,1], bias [1]).
    w = (jnp.arange(C, dtype=jnp.float32) * 0.1 + 0.05).reshape(1, C)
    b = jnp.array([[0.1]], dtype=jnp.float32)

    depth = jax.block_until_ready(midas_wrapper(x, w, b))

    ref = _reference(x, w, b)
    np.testing.assert_allclose(np.asarray(depth), np.asarray(ref),
                               rtol=1e-5, atol=1e-4)

    print("KERNEL_OK")
</pallas_src>

<mosaic_0001>
module attributes {stable_mosaic.version = 11 : i64} {
  func.func @midas_wrapper_kernel(%arg0: i32, %arg1: memref<1x4xf32, #tpu.memory_space<smem>>, %arg2: memref<1x1xf32, #tpu.memory_space<smem>>, %arg3: memref<1x4x16x16xf32, #tpu.memory_space<vmem>>, %arg4: memref<1x16x16xf32, #tpu.memory_space<vmem>>) attributes {dimension_semantics = [#tpu.dimension_semantics<parallel>], iteration_bounds = array<i64: 2>, scalar_prefetch = 0 : i64, scratch_operands = 0 : i64, tpu.core_type = #tpu.core_type<tc>, window_params = [{transform_indices = @transform_0, window_bounds = array<i64: 1, 4>}, {transform_indices = @transform_1, window_bounds = array<i64: 1, 1>}, {transform_indices = @transform_2, window_bounds = array<i64: 1, 4, 16, 16>}, {transform_indices = @transform_3, window_bounds = array<i64: 1, 16, 16>}]} {
    %c0 = arith.constant 0 : index
    %c0_0 = arith.constant 0 : index
    %c0_1 = arith.constant 0 : index
    %c0_2 = arith.constant 0 : index
    %0 = vector.load %arg3[%c0, %c0_0, %c0_1, %c0_2] : memref<1x4x16x16xf32, #tpu.memory_space<vmem>>, vector<1x1x16x16xf32>
    %1 = vector.shape_cast %0 : vector<1x1x16x16xf32> to vector<1x16x16xf32>
    %c0_3 = arith.constant 0 : index
    %c0_4 = arith.constant 0 : index
    %2 = memref.load %arg1[%c0_3, %c0_4] : memref<1x4xf32, #tpu.memory_space<smem>>
    %3 = vector.broadcast %2 : f32 to vector<1x16x16xf32>
    %4 = arith.mulf %1, %3 : vector<1x16x16xf32>
    %c0_5 = arith.constant 0 : index
    %c1 = arith.constant 1 : index
    %c0_6 = arith.constant 0 : index
    %c0_7 = arith.constant 0 : index
    %5 = vector.load %arg3[%c0_5, %c1, %c0_6, %c0_7] : memref<1x4x16x16xf32, #tpu.memory_space<vmem>>, vector<1x1x16x16xf32>
    %6 = vector.shape_cast %5 : vector<1x1x16x16xf32> to vector<1x16x16xf32>
    %c0_8 = arith.constant 0 : index
    %c1_9 = arith.constant 1 : index
    %7 = memref.load %arg1[%c0_8, %c1_9] : memref<1x4xf32, #tpu.memory_space<smem>>
    %8 = vector.broadcast %7 : f32 to vector<1x16x16xf32>
    %9 = arith.mulf %6, %8 : vector<1x16x16xf32>
    %10 = arith.addf %4, %9 : vector<1x16x16xf32>
    %c0_10 = arith.constant 0 : index
    %c2 = arith.constant 2 : index
    %c0_11 = arith.constant 0 : index
    %c0_12 = arith.constant 0 : index
    %11 = vector.load %arg3[%c0_10, %c2, %c0_11, %c0_12] : memref<1x4x16x16xf32, #tpu.memory_space<vmem>>, vector<1x1x16x16xf32>
    %12 = vector.shape_cast %11 : vector<1x1x16x16xf32> to vector<1x16x16xf32>
    %c0_13 = arith.constant 0 : index
    %c2_14 = arith.constant 2 : index
    %13 = memref.load %arg1[%c0_13, %c2_14] : memref<1x4xf32, #tpu.memory_space<smem>>
    %14 = vector.broadcast %13 : f32 to vector<1x16x16xf32>
    %15 = arith.mulf %12, %14 : vector<1x16x16xf32>
    %16 = arith.addf %10, %15 : vector<1x16x16xf32>
    %c0_15 = arith.constant 0 : index
    %c3 = arith.constant 3 : index
    %c0_16 = arith.constant 0 : index
    %c0_17 = arith.constant 0 : index
    %17 = vector.load %arg3[%c0_15, %c3, %c0_16, %c0_17] : memref<1x4x16x16xf32, #tpu.memory_space<vmem>>, vector<1x1x16x16xf32>
    %18 = vector.shape_cast %17 : vector<1x1x16x16xf32> to vector<1x16x16xf32>
    %c0_18 = arith.constant 0 : index
    %c3_19 = arith.constant 3 : index
    %19 = memref.load %arg1[%c0_18, %c3_19] : memref<1x4xf32, #tpu.memory_space<smem>>
    %20 = vector.broadcast %19 : f32 to vector<1x16x16xf32>
    %21 = arith.mulf %18, %20 : vector<1x16x16xf32>
    %22 = arith.addf %16, %21 : vector<1x16x16xf32>
    %c0_20 = arith.constant 0 : index
    %c0_21 = arith.constant 0 : index
    %23 = memref.load %arg2[%c0_20, %c0_21] : memref<1x1xf32, #tpu.memory_space<smem>>
    %24 = vector.broadcast %23 : f32 to vector<1x16x16xf32>
    %25 = arith.addf %22, %24 : vector<1x16x16xf32>
    %cst = arith.constant dense<0x7F800000> : vector<1xf32>
    %26 = vector.multi_reduction <minimumf>, %25, %cst [1, 2] : vector<1x16x16xf32> to vector<1xf32>
    %27 = vector.shape_cast %26 : vector<1xf32> to vector<1x1x1xf32>
    %cst_22 = arith.constant dense<0xFF800000> : vector<1xf32>
    %28 = vector.multi_reduction <maximumf>, %25, %cst_22 [1, 2] : vector<1x16x16xf32> to vector<1xf32>
    %29 = vector.shape_cast %28 : vector<1xf32> to vector<1x1x1xf32>
    %30 = vector.broadcast %27 : vector<1x1x1xf32> to vector<1x16x16xf32>
    %31 = arith.subf %25, %30 : vector<1x16x16xf32>
    %32 = arith.subf %29, %27 : vector<1x1x1xf32>
    %33 = vector.broadcast %32 : vector<1x1x1xf32> to vector<1x16x16xf32>
    %34 = arith.divf %31, %33 : vector<1x16x16xf32>
    %cst_23 = arith.constant 5.000000e-02 : f32
    %35 = vector.broadcast %cst_23 : f32 to vector<1x16x16xf32>
    %36 = arith.maximumf %34, %35 : vector<1x16x16xf32>
    %cst_24 = arith.constant 1.000000e+00 : f32
    %37 = vector.broadcast %cst_24 : f32 to vector<1x16x16xf32>
    %38 = arith.divf %37, %36 : vector<1x16x16xf32>
    %c0_25 = arith.constant 0 : index
    %c0_26 = arith.constant 0 : index
    %c0_27 = arith.constant 0 : index
    %39 = vector.load %arg4[%c0_25, %c0_26, %c0_27] : memref<1x16x16xf32, #tpu.memory_space<vmem>>, vector<1x16x16xf32>
    tpu.vector_store %arg4[%c0_25, %c0_26, %c0_27], %38 {strides = array<i32>} : memref<1x16x16xf32, #tpu.memory_space<vmem>>, vector<1x16x16xf32>,
    return
  }
  func.func @transform_0(%arg0: i32) -> (i32, i32) {
    %c0_i32 = arith.constant 0 : i32
    %c0_i32_0 = arith.constant 0 : i32
    %c0_i32_1 = arith.constant 0 : i32
    return %c0_i32, %c0_i32_0 : i32, i32
  }
  func.func @transform_1(%arg0: i32) -> (i32, i32) {
    %c0_i32 = arith.constant 0 : i32
    %c0_i32_0 = arith.constant 0 : i32
    %c0_i32_1 = arith.constant 0 : i32
    return %c0_i32, %c0_i32_0 : i32, i32
  }
  func.func @transform_2(%arg0: i32) -> (i32, i32, i32, i32) {
    %c0_i32 = arith.constant 0 : i32
    %c0_i32_0 = arith.constant 0 : i32
    %c0_i32_1 = arith.constant 0 : i32
    %c0_i32_2 = arith.constant 0 : i32
    return %arg0, %c0_i32, %c0_i32_0, %c0_i32_1 : i32, i32, i32, i32
  }
  func.func @transform_3(%arg0: i32) -> (i32, i32, i32) {
    %c0_i32 = arith.constant 0 : i32
    %c0_i32_0 = arith.constant 0 : i32
    %c0_i32_1 = arith.constant 0 : i32
    return %arg0, %c0_i32, %c0_i32_0 : i32, i32, i32
  }
}

</mosaic_0001>

<llo_original>
// kernel: tpu_custom_call.1
$region0: #{tpu_custom_call.1}
  #allocation0 [shape = 'u32[]', space=smem, size = 0x4, offset = 0x4, fixed_abs, tag = 'smem constant byte address 0x4 - core index']
  #allocation1 [shape = 'u32[144,128]{1,0:T(1,128)}', space=vmem, size = 0x12000, scoped, tag = 'internal scratch']
  #allocation2 [shape = 'f32[1,1]{1,0:T(1,128)S(6)}', space=smem, size = 0x200, scoped, tag = 'scoped memory for tpu_custom_call.1']
  %s0 = inlined_call_operand.vmem [shape: f32[1,4], index: 0, kind: input, shape index: {}]
  %s1 = inlined_call_operand.<no memory space> [shape: f32[1,1], index: 1, kind: input, shape index: {}]
  %s2 = inlined_call_operand.hbm [shape: f32[2,4,16,16], index: 2, kind: input, shape index: {}]
  %s3 = inlined_call_operand.hbm [shape: f32[2,16,16], index: 3, kind: output, shape index: {}]
  %s4 = sld [smem:[#allocation0]]
  $region53: #{tpu_custom_call.1} parent=0
    _
  %s6 = ssub.s32 1, %s4
  %s7 = scalar_select 0, %s6, %s4
  %8 = sst [smem:[#allocation2]] %s1
  $region1: #{tpu_custom_call.1} parent=0
    #allocation3 [shape = 'u8[512]{0}', space=smem, size = 0x200, scoped, tag = 'input window, operand 0, single buffered']
    #allocation4 [shape = 's32[2]{0}', space=sflag, size = 0x8, scoped, tag = 'scoped memory for tpu_custom_call.1']
    #allocation5 [shape = 's32[2]{0}', space=sflag, size = 0x8, scoped, tag = 'scoped memory for tpu_custom_call.1']
    #allocation6 [shape = 's32[2]{0}', space=sflag, size = 0x8, scoped, tag = 'scoped memory for tpu_custom_call.1']
    #allocation7 [shape = 'u8[65536]{0}', space=vmem, size = 0x10000, scoped, tag = 'input window, operand 2']
    #allocation8 [shape = 'u8[16384]{0}', space=vmem, size = 0x4000, scoped, tag = 'output window, operand 0']
    %9 = vsyncpa [#allocation6], 0
    %10 = vsyncpa [#allocation4], 0
    %s11 = scalar_lea.sflag [#allocation4], 1
    %12 = vsyncpa %s11, 0
    %13 = vsyncpa [#allocation5], 0
    %s14 = scalar_lea.sflag [#allocation5], 1
    %15 = vsyncpa %s14, 0
    loop: start=0, step=1, limit=4
    $region2: #{tpu_custom_call.1} parent=1 // loop_pre_header
      _
    $region3: #{tpu_custom_call.1} parent=1 // loop_header
      %s17 = sphi 0, %s21
      %p18 = scmp.ge.s32.totalorder %s17, 4
      %s25 = sphi 0, %s25
      %s27 = sphi 0, %s25
      %s28 = sphi 0, %s27
      %s42 = sphi 0, %s28
      %s46 = sphi 0, %s46
      %s48 = sphi 0, %s46
      %s49 = sphi 0, %s48
      %s63 = sphi 0, %s49
      %s69 = sphi 0, %s71
      %s72 = sphi 0, %s69
      %s73 = sphi 0, %s72
      %s89 = sphi 0, %s73
      %s95 = sphi 0, %s97
      %s98 = sphi 0, %s95
      %s99 = sphi 0, %s98
      %s115 = sphi 0, %s99
    $region4: #{tpu_custom_call.1} parent=1 // loop_header_branch
      %20 = sbr.rel (%p18) target = $region8
    $region5: #{tpu_custom_call.1} parent=1 // loop_body
      %s22 = ssub.s32 %s17, 1
      %s23 = ssub.s32 %s17, 2
      %s24 = sadd.s32 %s17, 1
      %s26 = sadd.s32 %s25, 1
      %p29 = scmp.eq.s32.totalorder %s17, 1
      %p30 = scmp.ne.s32.totalorder %s25, %s27
      %p31 = scmp.eq.s32.totalorder %s17, 0
      %p32 = por %p30, %p31
      %p33 = scmp.ne.s32.totalorder %s25, %s27
      %p34 = scmp.eq.s32.totalorder %s22, 1
      %p35 = por %p33, %p34
      %p36 = scmp.ne.s32.totalorder %s27, %s28
      %p37 = scmp.eq.s32.totalorder %s22, 0
      %p38 = por %p36, %p37
      %p39 = scmp.ne.s32.totalorder %s27, %s28
      %p40 = scmp.eq.s32.totalorder %s23, 1
      %p41 = por %p39, %p40
      %p43 = scmp.ne.s32.totalorder %s28, %s42
      %p44 = scmp.eq.s32.totalorder %s23, 0
      %p45 = por %p43, %p44
      %s47 = sadd.s32 %s46, 1
      %p50 = scmp.eq.s32.totalorder %s17, 1
      %p51 = scmp.ne.s32.totalorder %s46, %s48
      %p52 = scmp.eq.s32.totalorder %s17, 0
      %p53 = por %p51, %p52
      %p54 = scmp.ne.s32.totalorder %s46, %s48
      %p55 = scmp.eq.s32.totalorder %s22, 1
      %p56 = por %p54, %p55
      %p57 = scmp.ne.s32.totalorder %s48, %s49
      %p58 = scmp.eq.s32.totalorder %s22, 0
      %p59 = por %p57, %p58
      %p60 = scmp.ne.s32.totalorder %s48, %s49
      %p61 = scmp.eq.s32.totalorder %s23, 1
      %p62 = por %p60, %p61
      %p64 = scmp.ne.s32.totalorder %s49, %s63
      %p65 = scmp.eq.s32.totalorder %s23, 0
      %p66 = por %p64, %p65
      %s67 = ssub.s32 %s17, %s24
      %p68 = scmp.eq.s32.totalorder %s67, 0
      %s70 = sadd.s32 %s69, 1
      %s71 = scalar_select %p68, %s69, %s70
      %p74 = pneg %p68
      %p75 = scmp.eq.s32.totalorder %s17, 1
      %p76 = por %p74, %p75
      %p77 = scmp.ne.s32.totalorder %s69, %s72
      %p78 = scmp.eq.s32.totalorder %s17, 0
      %p79 = por %p77, %p78
      %p80 = scmp.ne.s32.totalorder %s69, %s72
      %p81 = scmp.eq.s32.totalorder %s22, 1
      %p82 = por %p80, %p81
      %p83 = scmp.ne.s32.totalorder %s72, %s73
      %p84 = scmp.eq.s32.totalorder %s22, 0
      %p85 = por %p83, %p84
      %p86 = scmp.ne.s32.totalorder %s72, %s73
      %p87 = scmp.eq.s32.totalorder %s23, 1
      %p88 = por %p86, %p87
      %p90 = scmp.ne.s32.totalorder %s73, %s89
      %p91 = scmp.eq.s32.totalorder %s23, 0
      %p92 = por %p90, %p91
      %s93 = ssub.s32 %s17, %s24
      %p94 = scmp.eq.s32.totalorder %s93, 0
      %s96 = sadd.s32 %s95, 1
      %s97 = scalar_select %p94, %s95, %s96
      %p100 = pneg %p94
      %p101 = scmp.eq.s32.totalorder %s17, 1
      %p102 = por %p100, %p101
      %p103 = scmp.ne.s32.totalorder %s95, %s98
      %p104 = scmp.eq.s32.totalorder %s17, 0
      %p105 = por %p103, %p104
      %p106 = scmp.ne.s32.totalorder %s95, %s98
      %p107 = scmp.eq.s32.totalorder %s22, 1
      %p108 = por %p106, %p107
      %p109 = scmp.ne.s32.totalorder %s98, %s99
      %p110 = scmp.eq.s32.totalorder %s22, 0
      %p111 = por %p109, %p110
      %p112 = scmp.ne.s32.totalorder %s98, %s99
      %p113 = scmp.eq.s32.totalorder %s23, 1
      %p114 = por %p112, %p113
      %p116 = scmp.ne.s32.totalorder %s99, %s115
      %p117 = scmp.eq.s32.totalorder %s23, 0
      %p118 = por %p116, %p117
      %p119 = scmp.le.s32.totalorder 1, %s17
      %p120 = scmp.lt.s32.totalorder %s17, 3
      %p121 = pnand %p119, %p120
      %p122 = pneg %p121
      // Predicated region
      $region9: #{tpu_custom_call.1} parent=5 // pred_check
        _
      $region10: #{tpu_custom_call.1} parent=5 // pred_check_branch
        %124 = sbr.rel (%p121) target = $region12
      $region11: #{tpu_custom_call.1} parent=5 // pred_region
        %s125 = ssub.s32 %s17, 1
        // Predicated region
        $region13: #{tpu_custom_call.1} parent=11 // pred_check
          %p126 = pneg %p38
        $region14: #{tpu_custom_call.1} parent=11 // pred_check_branch
          %128 = sbr.rel (%p126) target = $region16
        $region15: #{tpu_custom_call.1} parent=11 // pred_region
          %s130 = ssub.s32 16, 16
          %131 = vsyncadd [#allocation6], %s130
          %s133 = sshll.u32 %s0, 4
          %s134 = int_to_ptr.vmem [resolvable:$true] %s133
          %136 = dma.vmem_to_smem %s134, 16, [#allocation3], [#allocation6]
        $region16: #{tpu_custom_call.1} parent=11 // pred_fallthru
          _
        // Predicated region
        $region17: #{tpu_custom_call.1} parent=11 // pred_check
          %p137 = pneg %p59
        $region18: #{tpu_custom_call.1} parent=11 // pred_check_branch
          %139 = sbr.rel (%p137) target = $region20
        $region19: #{tpu_custom_call.1} parent=11 // pred_region
          _
        $region20: #{tpu_custom_call.1} parent=11 // pred_fallthru
          _
      $region12: #{tpu_custom_call.1} parent=5 // pred_fallthru
        _
      %p140 = scmp.lt.s32.totalorder %s17, 2
      // Predicated region
      $region21: #{tpu_custom_call.1} parent=5 // pred_check
        %p141 = pneg %p140
      $region22: #{tpu_custom_call.1} parent=5 // pred_check_branch
        %143 = sbr.rel (%p141) target = $region24
      $region23: #{tpu_custom_call.1} parent=5 // pred_region
        // Predicated region
        $region25: #{tpu_custom_call.1} parent=23 // pred_check
          %p144 = pneg %p79
        $region26: #{tpu_custom_call.1} parent=23 // pred_check_branch
          %146 = sbr.rel (%p144) target = $region28
        $region27: #{tpu_custom_call.1} parent=23 // pred_region
          %s147 = sand.u32 %s69, 1
          %s148 = scalar_lea.sflag [#allocation4], %s147
          %s149 = sand.u32 %s69, 1
          %s150 = smul.addr %s149, 64
          %s151 = scalar_lea.vmem [#allocation7], %s150
          %s153 = ssub.s32 1024, 1024
          %154 = vsyncadd %s148, %s153
          %s155 = smul.addr %s17, 8
          %s156 = smul.addr %s155, 128
          %s157 = scalar_lea.hbm %s2, %s156
          %s158 = sshll.u32 %s151, 4
          %s159 = int_to_ptr.vmem [resolvable:$true] %s158
          %164 = dma.hbm_to_vmem [thread:$0]  %s157, 1024, %s159, %s148, 128, 128, 8
        $region28: #{tpu_custom_call.1} parent=23 // pred_fallthru
          _
      $region24: #{tpu_custom_call.1} parent=5 // pred_fallthru
        _
      %p165 = scmp.le.s32.totalorder 1, %s17
      %p166 = scmp.lt.s32.totalorder %s17, 3
      %p167 = pnand %p165, %p166
      %p168 = pneg %p167
      // Predicated region
      $region29: #{tpu_custom_call.1} parent=5 // pred_check
        _
      $region30: #{tpu_custom_call.1} parent=5 // pred_check_branch
        %170 = sbr.rel (%p167) target = $region32
      $region31: #{tpu_custom_call.1} parent=5 // pred_region
        %s171 = ssub.s32 %s17, 1
        // Predicated region
        $region33: #{tpu_custom_call.1} parent=31 // pred_check
          %p172 = pneg %p38
        $region34: #{tpu_custom_call.1} parent=31 // pred_check_branch
          %174 = sbr.rel (%p172) target = $region36
        $region35: #{tpu_custom_call.1} parent=31 // pred_region
          %175 = dma.done [#allocation6], 16
        $region36: #{tpu_custom_call.1} parent=31 // pred_fallthru
          _
        %s176 = sand.u32 %s72, 1
        %s177 = scalar_lea.sflag [#allocation4], %s176
        %s178 = sand.u32 %s72, 1
        %s179 = smul.addr %s178, 64
        %s180 = scalar_lea.vmem [#allocation7], %s179
        // Predicated region
        $region37: #{tpu_custom_call.1} parent=31 // pred_check
          %p181 = pneg %p85
        $region38: #{tpu_custom_call.1} parent=31 // pred_check_branch
          %183 = sbr.rel (%p181) target = $region40
        $region39: #{tpu_custom_call.1} parent=31 // pred_region
          %184 = dma.done %s177, 1024
        $region40: #{tpu_custom_call.1} parent=31 // pred_fallthru
          _
        %185 = sfence
        %p186 = pneg %p38
        %p187 = pneg %p35
        %p188 = pneg %p59
        %p189 = pneg %p56
        %s190 = sand.u32 %s72, 1
        %s191 = scalar_lea.sflag [#allocation4], %s190
        %s192 = sand.u32 %s72, 1
        %s193 = smul.addr %s192, 64
        %s194 = scalar_lea.vmem [#allocation7], %s193
        %p195 = pneg %p85
        %p196 = pneg %p82
        %p197 = pneg %p111
        %p198 = pneg %p108
        %s199 = sand.u32 %s98, 1
        %s200 = scalar_lea.sflag [#allocation5], %s199
        %s201 = sand.u32 %s98, 1
        %s202 = smul.addr %s201, 16
        %s203 = scalar_lea.vmem [#allocation8], %s202
        %v204 = vld [vmem:[%s180] sm:$0xff]
        %v205 = vld [vmem:[%s180 + $0x8] sm:$0xff]
        %s206 = sld [smem:[#allocation3]]
        %v207 = vstv %s206
        %v208 = vmul.f32 %v204, %v207
        %v209 = vmul.f32 %v205, %v207
        %s210 = scalar_lea.vmem %s180, 16 [#allocation7]
        %v211 = vld [vmem:[%s210] sm:$0xff]
        %v212 = vld [vmem:[%s210 + $0x8] sm:$0xff]
        %s213 = sld [smem:[#allocation3 + $0x1]]
        %v214 = vstv %s213
        %v215 = vmul.f32 %v211, %v214
        %v216 = vmul.f32 %v212, %v214
        %v217 = vadd.f32 %v208, %v215
        %v218 = vadd.f32 %v209, %v216
        %s219 = scalar_lea.vmem %s180, 32 [#allocation7]
        %v220 = vld [vmem:[%s219] sm:$0xff]
        %v221 = vld [vmem:[%s219 + $0x8] sm:$0xff]
        %s222 = sld [smem:[#allocation3 + $0x2]]
        %v223 = vstv %s222
        %v224 = vmul.f32 %v220, %v223
        %v225 = vmul.f32 %v221, %v223
        %v226 = vadd.f32 %v217, %v224
        %v227 = vadd.f32 %v218, %v225
        %s228 = scalar_lea.vmem %s180, 48 [#allocation7]
        %v229 = vld [vmem:[%s228] sm:$0xff]
        %v230 = vld [vmem:[%s228 + $0x8] sm:$0xff]
        %s231 = sld [smem:[#allocation3 + $0x3]]
        %v232 = vstv %s231
        %v233 = vmul.f32 %v229, %v232
        %v234 = vmul.f32 %v230, %v232
        %v235 = vadd.f32 %v226, %v233
        %v236 = vadd.f32 %v227, %v234
        %s237 = sld [smem:[#allocation2]]
        %v238 = vstv %s237
        %v239 = vadd.f32 %v235, %v238
        %v240 = vadd.f32 %v236, %v238
        %vm241 = vcmask 130048
        %v242 = vsel %vm241, %v239, inf
        %v243 = vsel %vm241, %v240, inf
        %v244 = vmin.f32 %v242, %v243
        %245 = vmin.xlane.f32.xlu0 %v244
        %v246 = vpop.xlane.xlu0 %245
        %v247 = vrot.slane %v246, 4
        %v248 = vmin.f32 %v246, %v247
        %v249 = vrot.slane %v248, 2
        %v250 = vmin.f32 %v248, %v249
        %v251 = vrot.slane %v250, 1
        %v252 = vmin.f32 %v250, %v251
        %v253 = vsel %vm241, %v239, -inf
        %v254 = vsel %vm241, %v240, -inf
        %v255 = vmax.f32 %v253, %v254
        %256 = vmax.xlane.f32.xlu0 %v255
        %v257 = vpop.xlane.xlu0 %256
        %v258 = vrot.slane %v257, 4
        %v259 = vmax.f32 %v257, %v258
        %v260 = vrot.slane %v259, 2
        %v261 = vmax.f32 %v259, %v260
        %v262 = vrot.slane %v261, 1
        %v263 = vmax.f32 %v261, %v262
        %v264 = vsub.f32 %v239, %v252
        %v265 = vsub.f32 %v240, %v252
        %v266 = vsub.f32 %v263, %v252
        %v267 = vrcp.pop %v266
        %v268 = vmul.f32 %v264, %v267
        %v269 = vmul.f32 %v265, %v267
        %v270 = vmax.f32 %v268, 0.05
        %v271 = vmax.f32 %v269, 0.05
        %v272 = vrcp.pop %v270
        %v273 = vmul.f32 1.0, %v272
        %v274 = vrcp.pop %v271
        %v275 = vmul.f32 1.0, %v274
        %276 = vst.msk [vmem:[%s203] sm:$0xff] %vm241, %v273
        %277 = vst.msk [vmem:[%s203 + $0x8] sm:$0xff] %vm241, %v275
        %s278 = sand.u32 %s98, 1
        %s279 = scalar_lea.sflag [#allocation5], %s278
        %s280 = sand.u32 %s98, 1
        %s281 = smul.addr %s280, 16
        %s282 = scalar_lea.vmem [#allocation8], %s281
        // Predicated region
        $region41: #{tpu_custom_call.1} parent=31 // pred_check
          %p283 = pneg %p108
        $region42: #{tpu_custom_call.1} parent=31 // pred_check_branch
          %285 = sbr.rel (%p283) target = $region44
        $region43: #{tpu_custom_call.1} parent=31 // pred_region
          %s287 = ssub.s32 256, 256
          %288 = vsyncadd %s279, %s287
          %s289 = smul.addr %s22, 2
          %s290 = smul.addr %s289, 128
          %s291 = scalar_lea.hbm %s3, %s290
          %s292 = sshll.u32 %s282, 4
          %s293 = int_to_ptr.vmem [resolvable:$true] %s292
          %298 = dma.vmem_to_hbm [thread:$0]  %s293, 256, %s291, %s279, 128, 128, 8
        $region44: #{tpu_custom_call.1} parent=31 // pred_fallthru
          _
      $region32: #{tpu_custom_call.1} parent=5 // pred_fallthru
        _
      %p299 = scmp.le.s32.totalorder 2, %s17
      // Predicated region
      $region45: #{tpu_custom_call.1} parent=5 // pred_check
        %p300 = pneg %p299
      $region46: #{tpu_custom_call.1} parent=5 // pred_check_branch
        %302 = sbr.rel (%p300) target = $region48
      $region47: #{tpu_custom_call.1} parent=5 // pred_region
        %s303 = ssub.s32 %s17, 2
        // Predicated region
        $region49: #{tpu_custom_call.1} parent=47 // pred_check
          %p304 = pneg %p114
        $region50: #{tpu_custom_call.1} parent=47 // pred_check_branch
          %306 = sbr.rel (%p304) target = $region52
        $region51: #{tpu_custom_call.1} parent=47 // pred_region
          %s307 = sand.u32 %s99, 1
          %s308 = scalar_lea.sflag [#allocation5], %s307
          %s309 = sand.u32 %s99, 1
          %s310 = smul.addr %s309, 16
          %s311 = scalar_lea.vmem [#allocation8], %s310
          %312 = dma.done %s308, 256
        $region52: #{tpu_custom_call.1} parent=47 // pred_fallthru
          _
      $region48: #{tpu_custom_call.1} parent=5 // pred_fallthru
        _
    $region6: #{tpu_custom_call.1} parent=1 // loop_footer
      %s21 = sadd.s32 1, %s17
    $region7: #{tpu_custom_call.1} parent=1 // loop_footer_branch
      %16 = sbr.rel target = $region3
    $region8: #{tpu_custom_call.1} parent=1 // loop_exit
      _
    %313 = vsyncpa [#allocation4], 1
    %s314 = scalar_lea.sflag [#allocation4], 1
    %315 = vsyncpa %s314, 1
    %316 = vsyncpa [#allocation5], 1
    %s317 = scalar_lea.sflag [#allocation5], 1
    %318 = vsyncpa %s317, 1
    %319 = vsyncpa [#allocation6], 1
    %s320 = scalar_lea.sflag [#allocation6], 1
    %321 = vsyncpa %s320, 1

</llo_original>
